<compile_context>
chip_gen: v5e
topology: v5e:2x2
jax: 0.10.0
libtpu: 0.0.40
codegen_flags: <defaults>
</compile_context>

<pallas_src>
import functools

import jax
import jax.numpy as jnp
import numpy as np
from jax.experimental import pallas as pl
from jax.experimental.pallas import tpu as pltpu


# ----------------------------------------------------------------------------
# helpers
# ----------------------------------------------------------------------------
def _round_up(x, m):
    return ((x + m - 1) // m) * m


def _pick_tile(n, *, prefer_multi=False, cap=512):
    """Block size for a dim of extent n.

    n < 128  -> full 8-aligned extent (only legal non-128-multiple option).
    n >= 128 -> the multiple of 128 (<= cap) minimizing padded size; ties
                prefer >=2 tiles when prefer_multi (v7x megacore) and then the
                larger tile (fewer grid steps / bigger DMAs).
    """
    if n < 128:
        return _round_up(max(n, 8), 8)
    best_key, best_c = None, None
    for c in range(128, cap + 1, 128):
        padded = _round_up(n, c)
        ntiles = padded // c
        key = (padded, 0 if (ntiles >= 2 or not prefer_multi) else 1, -c)
        if best_key is None or key < best_key:
            best_key, best_c = key, c
    return best_c


# ----------------------------------------------------------------------------
# Stage A: line-graph MP  +  bn2/ReLU  +  e2n_linear
#   acc[:, t*Hp:(t+1)*Hp] += Al[t][i,k] @ hvl[k]        (aggregate first)
#   r_msg  = acc_cat @ W2_stack + bias_r                 (fused bf16 epilogue)
#   hvl'   = relu(r_msg * bn2_scale + bn2_shift)
#   he     = (hvl' @ We2n + be2n)  -> bf16 (stage-B matmul RHS only)
# ----------------------------------------------------------------------------
def stage_a_kernel(hvl_ref, al_ref, w2s_ref, bias_ref, bn_ref, we2n_ref,
                   be2n_ref, hvl_out_ref, he_ref, acc_ref, *, n_types, h_pad):
    k = pl.program_id(1)

    @pl.when(k == 0)
    def _init():
        acc_ref[...] = jnp.zeros_like(acc_ref)

    src = hvl_ref[...]                                 # [TEk, Hp] bf16 (host-cast)
    al = al_ref[...]                                   # [T_L, TEi, TEk] bf16
    for t in range(n_types):                           # per-type, no concat temp
        acc_ref[:, t * h_pad:(t + 1) * h_pad] += jnp.dot(
            al[t], src, preferred_element_type=jnp.float32)

    @pl.when(k == pl.num_programs(1) - 1)
    def _finish():
        r_msg = jnp.dot(acc_ref[...].astype(jnp.bfloat16), w2s_ref[...],
                        preferred_element_type=jnp.float32) + bias_ref[...]
        hvl_new = jnp.maximum(r_msg * bn_ref[0:1, :] + bn_ref[1:2, :], 0.0)
        hvl_out_ref[...] = hvl_new
        he_ref[...] = (jnp.dot(hvl_new.astype(jnp.bfloat16), we2n_ref[...],
                               preferred_element_type=jnp.float32)
                       + be2n_ref[...]).astype(jnp.bfloat16)


# ----------------------------------------------------------------------------
# Stage B: graph node MP  +  bn1/ReLU  (+ residual)
#   X = [he ; hv] (bf16), P[t] = [S_full[t] | Badj[t]]
#   acc[:, t*Hp:(t+1)*Hp] += P[t][i,k] @ X[k]
#   eu  = acc_cat @ W1_stack + bias_n
#   hv' = relu(eu * bn1_scale + bn1_shift) (+ hv if last layer)
# ----------------------------------------------------------------------------
def stage_b_kernel(x_ref, p_ref, w1s_ref, bias_ref, bn_ref, hv_ref,
                   hv_out_ref, acc_ref, *, n_types, h_pad, last_layer):
    k = pl.program_id(1)

    @pl.when(k == 0)
    def _init():
        acc_ref[...] = jnp.zeros_like(acc_ref)

    src = x_ref[...]                                   # [TR, Hp] bf16 (host-cast)
    p = p_ref[...]                                     # [T_G, TN, TR] bf16
    for t in range(n_types):
        acc_ref[:, t * h_pad:(t + 1) * h_pad] += jnp.dot(
            p[t], src, preferred_element_type=jnp.float32)

    @pl.when(k == pl.num_programs(1) - 1)
    def _finish():
        eu = jnp.dot(acc_ref[...].astype(jnp.bfloat16), w1s_ref[...],
                     preferred_element_type=jnp.float32) + bias_ref[...]
        hu = jnp.maximum(eu * bn_ref[0:1, :] + bn_ref[1:2, :], 0.0)
        if last_layer:
            hu = hu + hv_ref[...]
        hv_out_ref[...] = hu


# ----------------------------------------------------------------------------
# Wrapper: host-side lowering (padding, weight stacking, bias/BN folding) and
# the two pallas_calls.
# ----------------------------------------------------------------------------
def gearnet_edge_layer(hv, hvl, W2, b2, Al, We2n, be2n, W1, b1, S_full, Badj,
                       bn1, bn2, *, last_layer=True, eps=1e-5):
    f32, bf16 = jnp.float32, jnp.bfloat16
    N, H = hv.shape
    E = hvl.shape[0]
    T_L = W2.shape[0]
    T_G = W1.shape[0]

    Hp = _round_up(H, 128)                       # lane-dense hidden dim
    TE = _pick_tile(E, prefer_multi=True)        # edge rows + stage-A reduction
    Ep = _round_up(E, TE)
    TN = _pick_tile(N, prefer_multi=True)        # node rows
    Np = _round_up(N, TN)
    R = Ep + Np                                  # unified source axis (edges+nodes)
    TR = _pick_tile(R)                           # stage-B reduction
    Rp = _round_up(R, TR)

    def pad2(x, r, c, dtype=f32):
        x = jnp.asarray(x, f32)
        return jnp.pad(x, ((0, r - x.shape[0]), (0, c - x.shape[1]))).astype(dtype)

    # features: streamed matmul operands are bf16 already in HBM
    hvl_p = pad2(hvl, Ep, Hp, bf16)
    hv_res = pad2(hv, Np, Hp)                    # f32 (residual add)
    hv_src = hv_res.astype(bf16)                 # bf16 (stage-B reduction stream)

    # stacked per-etype weights in bf16 -> one lane-dense native-MXU epilogue
    W2s = jnp.pad(jnp.asarray(W2, f32),
                  ((0, 0), (0, Hp - H), (0, Hp - H))
                  ).reshape(T_L * Hp, Hp).astype(bf16)
    W1s = jnp.pad(jnp.asarray(W1, f32),
                  ((0, 0), (0, Hp - H), (0, Hp - H))
                  ).reshape(T_G * Hp, Hp).astype(bf16)
    We2n_p = pad2(We2n, Hp, Hp, bf16)
    be2n_p = pad2(jnp.asarray(be2n, f32).reshape(1, H), 1, Hp)

    # adjacency / scatter matrices in bf16 (0/1/count entries are exact)
    Al_p = jnp.pad(jnp.asarray(Al, f32),
                   ((0, 0), (0, Ep - E), (0, Ep - E))).astype(bf16)
    S_p = jnp.pad(jnp.asarray(S_full, f32), ((0, 0), (0, Np - N), (0, Ep - E)))
    B_p = jnp.pad(jnp.asarray(Badj, f32), ((0, 0), (0, Np - N), (0, Np - N)))
    P = jnp.pad(jnp.concatenate([S_p, B_p], axis=-1),
                ((0, 0), (0, 0), (0, Rp - R))).astype(bf16)

    # fold per-etype biases through the row-sums of the aggregation matrices
    bias_r = pad2(jnp.einsum('te,th->eh', jnp.sum(jnp.asarray(Al, f32), -1),
                             jnp.asarray(b2, f32)), Ep, Hp)
    deg = jnp.sum(jnp.asarray(S_full, f32), -1) + jnp.sum(jnp.asarray(Badj, f32), -1)
    bias_n = pad2(jnp.einsum('tn,th->nh', deg, jnp.asarray(b1, f32)), Np, Hp)

    # fold eval-mode BatchNorm into scale/shift
    def bn_fold(p):
        p = jnp.asarray(p, f32)
        scale = p[0] * jax.lax.rsqrt(p[3] + eps)
        shift = p[1] - p[2] * scale
        return pad2(jnp.stack([scale, shift]), 2, Hp)

    bn1_ss = bn_fold(bn1)
    bn2_ss = bn_fold(bn2)

    # Tiles capped at 512 -> peak VMEM (incl. double buffers) well under the
    # limit on every generation (v7x has only 64 MiB physical VMEM).
    cparams = pltpu.CompilerParams(
        dimension_semantics=("parallel", "arbitrary"),
        vmem_limit_bytes=48 << 20,
    )

    # ---- stage A: line graph ----
    hvl_out_p, he_p = pl.pallas_call(
        functools.partial(stage_a_kernel, n_types=T_L, h_pad=Hp),
        grid=(Ep // TE, Ep // TE),
        in_specs=[
            pl.BlockSpec((TE, Hp), lambda i, k: (k, 0)),            # hvl (reduction)
            pl.BlockSpec((T_L, TE, TE), lambda i, k: (0, i, k)),    # Al tiles
            pl.BlockSpec((T_L * Hp, Hp), lambda i, k: (0, 0)),      # W2 stack (bf16)
            pl.BlockSpec((TE, Hp), lambda i, k: (i, 0)),            # folded bias
            pl.BlockSpec((2, Hp), lambda i, k: (0, 0)),             # bn2 scale/shift
            pl.BlockSpec((Hp, Hp), lambda i, k: (0, 0)),            # e2n weight (bf16)
            pl.BlockSpec((1, Hp), lambda i, k: (0, 0)),             # e2n bias
        ],
        out_specs=(
            pl.BlockSpec((TE, Hp), lambda i, k: (i, 0)),
            pl.BlockSpec((TE, Hp), lambda i, k: (i, 0)),
        ),
        out_shape=(
            jax.ShapeDtypeStruct((Ep, Hp), f32),                    # hvl' (returned)
            jax.ShapeDtypeStruct((Ep, Hp), bf16),                   # he (stage-B RHS)
        ),
        scratch_shapes=[pltpu.VMEM((TE, T_L * Hp), f32)],
        compiler_params=cparams,
    )(hvl_p, Al_p, W2s, bias_r, bn2_ss, We2n_p, be2n_p)

    # unified bf16 source features for stage B: edges (he) then nodes (hv)
    # TODO(synk): could be eliminated by splitting the stage-B reduction grid
    #             into an edge segment and a node segment.
    X = jnp.concatenate([he_p, hv_src], axis=0)
    if Rp > R:
        X = jnp.pad(X, ((0, Rp - R), (0, 0)))

    # ---- stage B: graph nodes ----
    hv_out_p = pl.pallas_call(
        functools.partial(stage_b_kernel, n_types=T_G, h_pad=Hp,
                          last_layer=last_layer),
        grid=(Np // TN, Rp // TR),
        in_specs=[
            pl.BlockSpec((TR, Hp), lambda i, k: (k, 0)),            # X (reduction)
            pl.BlockSpec((T_G, TN, TR), lambda i, k: (0, i, k)),    # P = [S | Badj]
            pl.BlockSpec((T_G * Hp, Hp), lambda i, k: (0, 0)),      # W1 stack (bf16)
            pl.BlockSpec((TN, Hp), lambda i, k: (i, 0)),            # folded bias
            pl.BlockSpec((2, Hp), lambda i, k: (0, 0)),             # bn1 scale/shift
            pl.BlockSpec((TN, Hp), lambda i, k: (i, 0)),            # hv (residual)
        ],
        out_specs=pl.BlockSpec((TN, Hp), lambda i, k: (i, 0)),
        out_shape=jax.ShapeDtypeStruct((Np, Hp), f32),
        scratch_shapes=[pltpu.VMEM((TN, T_G * Hp), f32)],
        compiler_params=cparams,
    )(X, P, W1s, bias_n, bn1_ss, hv_res)

    return hv_out_p[:N, :H], hvl_out_p[:E, :H]


# ----------------------------------------------------------------------------
# Deterministic synthetic graph + parameters + reference check
# ----------------------------------------------------------------------------
if __name__ == "__main__":
    N, H = 8, 32          # nodes, hidden_dim
    T_G, E_PER = 2, 16    # graph edge types, edges per type
    E = T_G * E_PER       # line-graph nodes == total graph edges
    T_L = 3               # line-graph edge types (the '-1' type is skipped)

    key = jax.random.PRNGKey(0)
    keys = iter(jax.random.split(key, 24))

    # ---- graph structure (edge lists per etype) ----
    src = np.array(jax.random.randint(next(keys), (T_G, E_PER), 0, N))
    dst = np.array(jax.random.randint(next(keys), (T_G, E_PER), 0, N))

    # edge->dst-node scatter over the FULL edge axis (no contiguity assumption)
    # and dst<-src adjacency (counts) per graph etype
    S_full = np.zeros((T_G, N, E), np.float32)
    Badj = np.zeros((T_G, N, N), np.float32)
    for t in range(T_G):
        for e in range(E_PER):
            ge = t * E_PER + e
            S_full[t, dst[t, e], ge] = 1.0
            Badj[t, dst[t, e], src[t, e]] += 1.0

    # line graph: node e' -> node e if dst(e') == src(e); typed deterministically
    flat_src = src.reshape(-1)
    flat_dst = dst.reshape(-1)
    Al = np.zeros((T_L, E, E), np.float32)
    for ep in range(E):
        for e in range(E):
            if ep != e and flat_dst[ep] == flat_src[e]:
                Al[(ep + e) % T_L, e, ep] += 1.0

    # ---- features ----
    hv = jax.random.normal(next(keys), (N, H), jnp.float32)
    hvl = jax.random.normal(next(keys), (E, H), jnp.float32)

    # ---- parameters (deterministic, PyTorch-Linear-style uniform init) ----
    def lin_init(k, shape, fan_in):
        b = 1.0 / np.sqrt(fan_in)
        return jax.random.uniform(k, shape, jnp.float32, -b, b)

    W2 = lin_init(next(keys), (T_L, H, H), H)
    b2 = lin_init(next(keys), (T_L, H), H)
    We2n = lin_init(next(keys), (H, H), H)
    be2n = lin_init(next(keys), (1, H), H)
    W1 = lin_init(next(keys), (T_G, H, H), H)
    b1 = lin_init(next(keys), (T_G, H), H)

    def bn_params(k):
        k1, k2, k3, k4 = jax.random.split(k, 4)
        gamma = jax.random.uniform(k1, (H,), jnp.float32, 0.5, 1.5)
        beta = 0.1 * jax.random.normal(k2, (H,), jnp.float32)
        mean = 0.1 * jax.random.normal(k3, (H,), jnp.float32)
        var = jax.random.uniform(k4, (H,), jnp.float32, 0.5, 1.5)
        return jnp.stack([gamma, beta, mean, var])  # [4, H]

    bn1 = bn_params(next(keys))
    bn2 = bn_params(next(keys))

    hv_out, hvl_out = gearnet_edge_layer(
        hv, hvl, W2, b2, Al, We2n, be2n, W1, b1, S_full, Badj,
        bn1, bn2, last_layer=True)
    jax.block_until_ready((hv_out, hvl_out))

    # ---- pure-numpy reference (eval-mode semantics) ----
    def np32(x):
        return np.asarray(x, np.float32)

    def bnrelu(x, p):
        g, b, m, v = p
        return np.maximum((x - m) / np.sqrt(v + 1e-5) * g + b, 0.0)

    hv_n, hvl_n = np32(hv), np32(hvl)
    W2n, b2n, W1n, b1n = np32(W2), np32(b2), np32(W1), np32(b1)
    r = np.zeros_like(hvl_n)
    for t in range(T_L):
        r += Al[t] @ (hvl_n @ W2n[t] + b2n[t])
    ref_hvl = bnrelu(r, np32(bn2))
    he_ref = ref_hvl @ np32(We2n) + np32(be2n)
    eu = np.zeros_like(hv_n)
    for t in range(T_G):
        eu += S_full[t] @ (he_ref @ W1n[t] + b1n[t])
        eu += Badj[t] @ (hv_n @ W1n[t] + b1n[t])
    ref_hv = bnrelu(eu, np32(bn1)) + hv_n

    assert hv_out.shape == (N, H) and hvl_out.shape == (E, H)
    assert bool(jnp.all(jnp.isfinite(hv_out))) and bool(jnp.all(jnp.isfinite(hvl_out)))
    assert np.allclose(np.asarray(hvl_out), ref_hvl, rtol=1e-1, atol=1e-1)
    assert np.allclose(np.asarray(hv_out), ref_hv, rtol=1e-1, atol=1e-1)
    print("KERNEL_OK")
</pallas_src>

<mosaic_0001>
module attributes {stable_mosaic.version = 11 : i64} {
  func.func @stage_a_kernel(%arg0: i32, %arg1: i32, %arg2: memref<32x128xbf16, #tpu.memory_space<vmem>>, %arg3: memref<3x32x32xbf16, #tpu.memory_space<vmem>>, %arg4: memref<384x128xbf16, #tpu.memory_space<vmem>>, %arg5: memref<32x128xf32, #tpu.memory_space<vmem>>, %arg6: memref<2x128xf32, #tpu.memory_space<vmem>>, %arg7: memref<128x128xbf16, #tpu.memory_space<vmem>>, %arg8: memref<1x128xf32, #tpu.memory_space<vmem>>, %arg9: memref<32x128xf32, #tpu.memory_space<vmem>>, %arg10: memref<32x128xbf16, #tpu.memory_space<vmem>>, %arg11: memref<32x384xf32, #tpu.memory_space<vmem>>) attributes {dimension_semantics = [#tpu.dimension_semantics<parallel>, #tpu.dimension_semantics<arbitrary>], iteration_bounds = array<i64: 1, 1>, scalar_prefetch = 0 : i64, scratch_operands = 1 : i64, tpu.core_type = #tpu.core_type<tc>, window_params = [{transform_indices = @transform_0, window_bounds = array<i64: 32, 128>}, {transform_indices = @transform_1, window_bounds = array<i64: 3, 32, 32>}, {pipeline_mode = #tpu.pipeline_mode<synchronous>, transform_indices = @transform_2, window_bounds = array<i64: 384, 128>}, {transform_indices = @transform_3, window_bounds = array<i64: 32, 128>}, {pipeline_mode = #tpu.pipeline_mode<synchronous>, transform_indices = @transform_4, window_bounds = array<i64: 2, 128>}, {pipeline_mode = #tpu.pipeline_mode<synchronous>, transform_indices = @transform_5, window_bounds = array<i64: 128, 128>}, {pipeline_mode = #tpu.pipeline_mode<synchronous>, transform_indices = @transform_6, window_bounds = array<i64: 1, 128>}, {transform_indices = @transform_7, window_bounds = array<i64: 32, 128>}, {transform_indices = @transform_8, window_bounds = array<i64: 32, 128>}]} {
    %c0_i32 = arith.constant 0 : i32
    %0 = arith.cmpi eq, %arg1, %c0_i32 : i32
    %1 = arith.extui %0 : i1 to i32
    %c0_i32_0 = arith.constant 0 : i32
    %2 = arith.cmpi ne, %1, %c0_i32_0 : i32
    scf.if %2 {
      %cst_19 = arith.constant 0.000000e+00 : f32
      %26 = vector.broadcast %cst_19 : f32 to vector<32x384xf32>
      %c0_20 = arith.constant 0 : index
      %c0_21 = arith.constant 0 : index
      %27 = vector.load %arg11[%c0_20, %c0_21] : memref<32x384xf32, #tpu.memory_space<vmem>>, vector<32x384xf32>
      tpu.vector_store %arg11[%c0_20, %c0_21], %26 {strides = array<i32>} : memref<32x384xf32, #tpu.memory_space<vmem>>, vector<32x384xf32>,
    } else {
    }
    %c0 = arith.constant 0 : index
    %c0_1 = arith.constant 0 : index
    %3 = vector.load %arg2[%c0, %c0_1] : memref<32x128xbf16, #tpu.memory_space<vmem>>, vector<32x128xbf16>
    %c0_2 = arith.constant 0 : index
    %c0_3 = arith.constant 0 : index
    %c0_4 = arith.constant 0 : index
    %4 = vector.load %arg3[%c0_2, %c0_3, %c0_4] : memref<3x32x32xbf16, #tpu.memory_space<vmem>>, vector<3x32x32xbf16>
    %c0_5 = arith.constant 0 : index
    %c0_6 = arith.constant 0 : index
    %5 = vector.load %arg11[%c0_5, %c0_6] : memref<32x384xf32, #tpu.memory_space<vmem>>, vector<32x128xf32>
    %6 = vector.extract_strided_slice %4 {offsets = [0, 0, 0], sizes = [1, 32, 32], strides = [1, 1, 1]} : vector<3x32x32xbf16> to vector<1x32x32xbf16>
    %7 = vector.shape_cast %6 : vector<1x32x32xbf16> to vector<32x32xbf16>
    %cst = arith.constant dense<0.000000e+00> : vector<32x128xf32>
    %8 = tpu.matmul %7, %3, %cst {dimension_numbers = #tpu.dot_dimension_numbers<[1], [0], [0], [1], [0, 0, 1, 1], [], []>} : vector<32x32xbf16>, vector<32x128xbf16>, vector<32x128xf32> -> vector<32x128xf32>
    %9 = arith.addf %5, %8 : vector<32x128xf32>
    %c0_7 = arith.constant 0 : index
    %c0_8 = arith.constant 0 : index
    %10 = vector.load %arg11[%c0_7, %c0_8] : memref<32x384xf32, #tpu.memory_space<vmem>>, vector<32x128xf32>
    tpu.vector_store %arg11[%c0_7, %c0_8], %9 {strides = array<i32>} : memref<32x384xf32, #tpu.memory_space<vmem>>, vector<32x128xf32>,
    %c0_9 = arith.constant 0 : index
    %c128 = arith.constant 128 : index
    %11 = vector.load %arg11[%c0_9, %c128] : memref<32x384xf32, #tpu.memory_space<vmem>>, vector<32x128xf32>
    %12 = vector.extract_strided_slice %4 {offsets = [1, 0, 0], sizes = [1, 32, 32], strides = [1, 1, 1]} : vector<3x32x32xbf16> to vector<1x32x32xbf16>
    %13 = vector.shape_cast %12 : vector<1x32x32xbf16> to vector<32x32xbf16>
    %cst_10 = arith.constant dense<0.000000e+00> : vector<32x128xf32>
    %14 = tpu.matmul %13, %3, %cst_10 {dimension_numbers = #tpu.dot_dimension_numbers<[1], [0], [0], [1], [0, 0, 1, 1], [], []>} : vector<32x32xbf16>, vector<32x128xbf16>, vector<32x128xf32> -> vector<32x128xf32>
    %15 = arith.addf %11, %14 : vector<32x128xf32>
    %c0_11 = arith.constant 0 : index
    %c128_12 = arith.constant 128 : index
    %16 = vector.load %arg11[%c0_11, %c128_12] : memref<32x384xf32, #tpu.memory_space<vmem>>, vector<32x128xf32>
    tpu.vector_store %arg11[%c0_11, %c128_12], %15 {strides = array<i32>} : memref<32x384xf32, #tpu.memory_space<vmem>>, vector<32x128xf32>,
    %c0_13 = arith.constant 0 : index
    %c256 = arith.constant 256 : index
    %17 = vector.load %arg11[%c0_13, %c256] : memref<32x384xf32, #tpu.memory_space<vmem>>, vector<32x128xf32>
    %18 = vector.extract_strided_slice %4 {offsets = [2, 0, 0], sizes = [1, 32, 32], strides = [1, 1, 1]} : vector<3x32x32xbf16> to vector<1x32x32xbf16>
    %19 = vector.shape_cast %18 : vector<1x32x32xbf16> to vector<32x32xbf16>
    %cst_14 = arith.constant dense<0.000000e+00> : vector<32x128xf32>
    %20 = tpu.matmul %19, %3, %cst_14 {dimension_numbers = #tpu.dot_dimension_numbers<[1], [0], [0], [1], [0, 0, 1, 1], [], []>} : vector<32x32xbf16>, vector<32x128xbf16>, vector<32x128xf32> -> vector<32x128xf32>
    %21 = arith.addf %17, %20 : vector<32x128xf32>
    %c0_15 = arith.constant 0 : index
    %c256_16 = arith.constant 256 : index
    %22 = vector.load %arg11[%c0_15, %c256_16] : memref<32x384xf32, #tpu.memory_space<vmem>>, vector<32x128xf32>
    tpu.vector_store %arg11[%c0_15, %c256_16], %21 {strides = array<i32>} : memref<32x384xf32, #tpu.memory_space<vmem>>, vector<32x128xf32>,
    %c0_i32_17 = arith.constant 0 : i32
    %23 = arith.cmpi eq, %arg1, %c0_i32_17 : i32
    %24 = arith.extui %23 : i1 to i32
    %c0_i32_18 = arith.constant 0 : i32
    %25 = arith.cmpi ne, %24, %c0_i32_18 : i32
    scf.if %25 {
      %c0_19 = arith.constant 0 : index
      %c0_20 = arith.constant 0 : index
      %26 = vector.load %arg11[%c0_19, %c0_20] : memref<32x384xf32, #tpu.memory_space<vmem>>, vector<32x384xf32>
      %27 = arith.truncf %26 : vector<32x384xf32> to vector<32x384xbf16>
      %c0_21 = arith.constant 0 : index
      %c0_22 = arith.constant 0 : index
      %28 = vector.load %arg4[%c0_21, %c0_22] : memref<384x128xbf16, #tpu.memory_space<vmem>>, vector<384x128xbf16>
      %cst_23 = arith.constant dense<0.000000e+00> : vector<32x128xf32>
      %29 = tpu.matmul %27, %28, %cst_23 {dimension_numbers = #tpu.dot_dimension_numbers<[1], [0], [0], [1], [0, 0, 1, 1], [], []>} : vector<32x384xbf16>, vector<384x128xbf16>, vector<32x128xf32> -> vector<32x128xf32>
      %c0_24 = arith.constant 0 : index
      %c0_25 = arith.constant 0 : index
      %30 = vector.load %arg5[%c0_24, %c0_25] : memref<32x128xf32, #tpu.memory_space<vmem>>, vector<32x128xf32>
      %31 = arith.addf %29, %30 : vector<32x128xf32>
      %c0_26 = arith.constant 0 : index
      %c0_27 = arith.constant 0 : index
      %32 = vector.load %arg6[%c0_26, %c0_27] : memref<2x128xf32, #tpu.memory_space<vmem>>, vector<1x128xf32>
      %33 = vector.broadcast %32 : vector<1x128xf32> to vector<32x128xf32>
      %34 = arith.mulf %31, %33 : vector<32x128xf32>
      %c1 = arith.constant 1 : index
      %c0_28 = arith.constant 0 : index
      %35 = vector.load %arg6[%c1, %c0_28] : memref<2x128xf32, #tpu.memory_space<vmem>>, vector<1x128xf32>
      %36 = vector.broadcast %35 : vector<1x128xf32> to vector<32x128xf32>
      %37 = arith.addf %34, %36 : vector<32x128xf32>
      %cst_29 = arith.constant 0.000000e+00 : f32
      %38 = vector.broadcast %cst_29 : f32 to vector<32x128xf32>
      %39 = arith.maximumf %37, %38 : vector<32x128xf32>
      %c0_30 = arith.constant 0 : index
      %c0_31 = arith.constant 0 : index
      %40 = vector.load %arg9[%c0_30, %c0_31] : memref<32x128xf32, #tpu.memory_space<vmem>>, vector<32x128xf32>
      tpu.vector_store %arg9[%c0_30, %c0_31], %39 {strides = array<i32>} : memref<32x128xf32, #tpu.memory_space<vmem>>, vector<32x128xf32>,
      %41 = arith.truncf %39 : vector<32x128xf32> to vector<32x128xbf16>
      %c0_32 = arith.constant 0 : index
      %c0_33 = arith.constant 0 : index
      %42 = vector.load %arg7[%c0_32, %c0_33] : memref<128x128xbf16, #tpu.memory_space<vmem>>, vector<128x128xbf16>
      %cst_34 = arith.constant dense<0.000000e+00> : vector<32x128xf32>
      %43 = tpu.matmul %41, %42, %cst_34 {dimension_numbers = #tpu.dot_dimension_numbers<[1], [0], [0], [1], [0, 0, 1, 1], [], []>} : vector<32x128xbf16>, vector<128x128xbf16>, vector<32x128xf32> -> vector<32x128xf32>
      %c0_35 = arith.constant 0 : index
      %c0_36 = arith.constant 0 : index
      %44 = vector.load %arg8[%c0_35, %c0_36] : memref<1x128xf32, #tpu.memory_space<vmem>>, vector<1x128xf32>
      %45 = vector.broadcast %44 : vector<1x128xf32> to vector<32x128xf32>
      %46 = arith.addf %43, %45 : vector<32x128xf32>
      %47 = arith.truncf %46 : vector<32x128xf32> to vector<32x128xbf16>
      %c0_37 = arith.constant 0 : index
      %c0_38 = arith.constant 0 : index
      %48 = vector.load %arg10[%c0_37, %c0_38] : memref<32x128xbf16, #tpu.memory_space<vmem>>, vector<32x128xbf16>
      tpu.vector_store %arg10[%c0_37, %c0_38], %47 {strides = array<i32>} : memref<32x128xbf16, #tpu.memory_space<vmem>>, vector<32x128xbf16>,
    } else {
    }
    return
  }
  func.func @transform_0(%arg0: i32, %arg1: i32) -> (i32, i32) {
    %c0_i32 = arith.constant 0 : i32
    %c0_i32_0 = arith.constant 0 : i32
    return %arg1, %c0_i32 : i32, i32
  }
  func.func @transform_1(%arg0: i32, %arg1: i32) -> (i32, i32, i32) {
    %c0_i32 = arith.constant 0 : i32
    %c0_i32_0 = arith.constant 0 : i32
    return %c0_i32, %arg0, %arg1 : i32, i32, i32
  }
  func.func @transform_2(%arg0: i32, %arg1: i32) -> (i32, i32) {
    %c0_i32 = arith.constant 0 : i32
    %c0_i32_0 = arith.constant 0 : i32
    %c0_i32_1 = arith.constant 0 : i32
    return %c0_i32, %c0_i32_0 : i32, i32
  }
  func.func @transform_3(%arg0: i32, %arg1: i32) -> (i32, i32) {
    %c0_i32 = arith.constant 0 : i32
    %c0_i32_0 = arith.constant 0 : i32
    return %arg0, %c0_i32 : i32, i32
  }
  func.func @transform_4(%arg0: i32, %arg1: i32) -> (i32, i32) {
    %c0_i32 = arith.constant 0 : i32
    %c0_i32_0 = arith.constant 0 : i32
    %c0_i32_1 = arith.constant 0 : i32
    return %c0_i32, %c0_i32_0 : i32, i32
  }
  func.func @transform_5(%arg0: i32, %arg1: i32) -> (i32, i32) {
    %c0_i32 = arith.constant 0 : i32
    %c0_i32_0 = arith.constant 0 : i32
    %c0_i32_1 = arith.constant 0 : i32
    return %c0_i32, %c0_i32_0 : i32, i32
  }
  func.func @transform_6(%arg0: i32, %arg1: i32) -> (i32, i32) {
    %c0_i32 = arith.constant 0 : i32
    %c0_i32_0 = arith.constant 0 : i32
    %c0_i32_1 = arith.constant 0 : i32
    return %c0_i32, %c0_i32_0 : i32, i32
  }
  func.func @transform_7(%arg0: i32, %arg1: i32) -> (i32, i32) {
    %c0_i32 = arith.constant 0 : i32
    %c0_i32_0 = arith.constant 0 : i32
    return %arg0, %c0_i32 : i32, i32
  }
  func.func @transform_8(%arg0: i32, %arg1: i32) -> (i32, i32) {
    %c0_i32 = arith.constant 0 : i32
    %c0_i32_0 = arith.constant 0 : i32
    return %arg0, %c0_i32 : i32, i32
  }
}

</mosaic_0001>

<llo_original>
// kernel: tpu_custom_call.1
$region0: #{tpu_custom_call.1}
  #allocation0 [shape = 'u32[]', space=smem, size = 0x4, offset = 0x4, fixed_abs, tag = 'smem constant byte address 0x4 - core index']
  #allocation1 [shape = 'u32[72,128]{1,0:T(1,128)}', space=vmem, size = 0x9000, scoped, tag = 'internal scratch']
  #allocation2 [shape = 'f32[32,384]{1,0:T(8,128)}', space=vmem, size = 0xc000, scoped, tag = 'scratch operand']
  %s0 = inlined_call_operand.hbm [shape: bf16[32,128], index: 0, kind: input, shape index: {}]
  %s1 = inlined_call_operand.hbm [shape: bf16[3,32,32], index: 1, kind: input, shape index: {}]
  %s2 = inlined_call_operand.hbm [shape: bf16[384,128], index: 2, kind: input, shape index: {}]
  %s3 = inlined_call_operand.hbm [shape: f32[32,128], index: 3, kind: input, shape index: {}]
  %s4 = inlined_call_operand.vmem [shape: f32[2,128], index: 4, kind: input, shape index: {}]
  %s5 = inlined_call_operand.hbm [shape: bf16[128,128], index: 5, kind: input, shape index: {}]
  %s6 = inlined_call_operand.vmem [shape: f32[1,128], index: 6, kind: input, shape index: {}]
  %s7 = inlined_call_operand.hbm [shape: f32[32,128], index: 7, kind: output, shape index: {0}]
  %s8 = inlined_call_operand.hbm [shape: bf16[32,128], index: 8, kind: output, shape index: {1}]
  %9 = xla_tuple %s7, %s8
  %s10 = sld [smem:[#allocation0]]
  $region74: #{tpu_custom_call.1} parent=0
    _
  %s12 = ssub.s32 1, %s10
  %s13 = scalar_select 0, %s12, %s10
  $region1: #{tpu_custom_call.1} parent=0
    #allocation3 [shape = 'u8[8192]{0}', space=vmem, size = 0x2000, scoped, tag = 'input window, operand 0, single buffered']
    #allocation4 [shape = 's32[1]{0}', space=sflag, size = 0x4, scoped, tag = 'scoped memory for tpu_custom_call.1']
    #allocation5 [shape = 's32[1]{0}', space=sflag, size = 0x4, scoped, tag = 'scoped memory for tpu_custom_call.1']
    #allocation6 [shape = 'u8[24576]{0}', space=vmem, size = 0x6000, scoped, tag = 'input window, operand 1, single buffered']
    #allocation7 [shape = 's32[1]{0}', space=sflag, size = 0x4, scoped, tag = 'scoped memory for tpu_custom_call.1']
    #allocation8 [shape = 'u8[98304]{0}', space=vmem, size = 0x18000, scoped, tag = 'input window, operand 2, single buffered']
    #allocation9 [shape = 'u8[16384]{0}', space=vmem, size = 0x4000, scoped, tag = 'input window, operand 3, single buffered']
    #allocation10 [shape = 's32[1]{0}', space=sflag, size = 0x4, scoped, tag = 'scoped memory for tpu_custom_call.1']
    #allocation11 [shape = 'u8[32768]{0}', space=vmem, size = 0x8000, scoped, tag = 'input window, operand 5, single buffered']
    #allocation12 [shape = 'u8[16384]{0}', space=vmem, size = 0x4000, scoped, tag = 'output window, operand 0, single buffered']
    #allocation13 [shape = 'u8[8192]{0}', space=vmem, size = 0x2000, scoped, tag = 'output window, operand 1, single buffered']
    #allocation14 [shape = 's32[1]{0}', space=sflag, size = 0x4, scoped, tag = 'scoped memory for tpu_custom_call.1']
    %14 = vsyncpa [#allocation4], 0
    %15 = vsyncpa [#allocation7], 0
    %16 = vsyncpa [#allocation10], 0
    %17 = vsyncpa [#allocation5], 0
    %18 = vsyncpa [#allocation14], 0
    // Predicated region
    $region2: #{tpu_custom_call.1} parent=1 // pred_check
      _
    $region3: #{tpu_custom_call.1} parent=1 // pred_check_branch
      %20 = sbr.rel (0) target = $region5
    $region4: #{tpu_custom_call.1} parent=1 // pred_region
      %22 = vsyncadd [#allocation4], 0
      %s23 = sshll.u32 %s0, 4
      %s24 = int_to_ptr.hbm [resolvable:$true] %s23
      %s25 = sshll.u32 [#allocation3], 4
      %s26 = int_to_ptr.vmem [resolvable:$true] %s25
      %31 = dma.hbm_to_vmem [thread:$0]  %s24, 256, %s26, [#allocation4], 64, 64, 4
    $region5: #{tpu_custom_call.1} parent=1 // pred_fallthru
      _
    // Predicated region
    $region6: #{tpu_custom_call.1} parent=1 // pred_check
      _
    $region7: #{tpu_custom_call.1} parent=1 // pred_check_branch
      %33 = sbr.rel (0) target = $region9
    $region8: #{tpu_custom_call.1} parent=1 // pred_region
      %35 = vsyncadd [#allocation7], 0
      %s36 = sshll.u32 %s1, 4
      %s37 = int_to_ptr.hbm [resolvable:$true] %s36
      %s38 = sshll.u32 [#allocation6], 4
      %s39 = int_to_ptr.vmem [resolvable:$true] %s38
      %44 = dma.hbm_to_vmem [thread:$0]  %s37, 768, %s39, [#allocation7], 64, 64, 4
    $region9: #{tpu_custom_call.1} parent=1 // pred_fallthru
      _
    // Predicated region
    $region10: #{tpu_custom_call.1} parent=1 // pred_check
      _
    $region11: #{tpu_custom_call.1} parent=1 // pred_check_branch
      %46 = sbr.rel (0) target = $region13
    $region12: #{tpu_custom_call.1} parent=1 // pred_region
      %48 = vsyncadd [#allocation7], 0
      %s49 = sshll.u32 %s2, 4
      %s50 = int_to_ptr.hbm [resolvable:$true] %s49
      %s51 = sshll.u32 [#allocation8], 4
      %s52 = int_to_ptr.vmem [resolvable:$true] %s51
      %57 = dma.hbm_to_vmem [thread:$0]  %s50, 3072, %s52, [#allocation7], 64, 64, 4
    $region13: #{tpu_custom_call.1} parent=1 // pred_fallthru
      _
    // Predicated region
    $region14: #{tpu_custom_call.1} parent=1 // pred_check
      _
    $region15: #{tpu_custom_call.1} parent=1 // pred_check_branch
      %59 = sbr.rel (0) target = $region17
    $region16: #{tpu_custom_call.1} parent=1 // pred_region
      %61 = vsyncadd [#allocation10], 0
      %s62 = sshll.u32 %s3, 4
      %s63 = int_to_ptr.hbm [resolvable:$true] %s62
      %s64 = sshll.u32 [#allocation9], 4
      %s65 = int_to_ptr.vmem [resolvable:$true] %s64
      %70 = dma.hbm_to_vmem [thread:$0]  %s63, 512, %s65, [#allocation10], 128, 128, 8
    $region17: #{tpu_custom_call.1} parent=1 // pred_fallthru
      _
    // Predicated region
    $region18: #{tpu_custom_call.1} parent=1 // pred_check
      _
    $region19: #{tpu_custom_call.1} parent=1 // pred_check_branch
      %72 = sbr.rel (0) target = $region21
    $region20: #{tpu_custom_call.1} parent=1 // pred_region
      _
    $region21: #{tpu_custom_call.1} parent=1 // pred_fallthru
      _
    // Predicated region
    $region22: #{tpu_custom_call.1} parent=1 // pred_check
      _
    $region23: #{tpu_custom_call.1} parent=1 // pred_check_branch
      %74 = sbr.rel (0) target = $region25
    $region24: #{tpu_custom_call.1} parent=1 // pred_region
      %76 = vsyncadd [#allocation10], 0
      %s77 = sshll.u32 %s5, 4
      %s78 = int_to_ptr.hbm [resolvable:$true] %s77
      %s79 = sshll.u32 [#allocation11], 4
      %s80 = int_to_ptr.vmem [resolvable:$true] %s79
      %85 = dma.hbm_to_vmem [thread:$0]  %s78, 1024, %s80, [#allocation10], 64, 64, 4
    $region25: #{tpu_custom_call.1} parent=1 // pred_fallthru
      _
    // Predicated region
    $region26: #{tpu_custom_call.1} parent=1 // pred_check
      _
    $region27: #{tpu_custom_call.1} parent=1 // pred_check_branch
      %87 = sbr.rel (0) target = $region29
    $region28: #{tpu_custom_call.1} parent=1 // pred_region
      _
    $region29: #{tpu_custom_call.1} parent=1 // pred_fallthru
      _
    // Predicated region
    $region30: #{tpu_custom_call.1} parent=1 // pred_check
      _
    $region31: #{tpu_custom_call.1} parent=1 // pred_check_branch
      %89 = sbr.rel (0) target = $region33
    $region32: #{tpu_custom_call.1} parent=1 // pred_region
      %91 = dma.done [#allocation4], 256
    $region33: #{tpu_custom_call.1} parent=1 // pred_fallthru
      _
    // Predicated region
    $region34: #{tpu_custom_call.1} parent=1 // pred_check
      _
    $region35: #{tpu_custom_call.1} parent=1 // pred_check_branch
      %93 = sbr.rel (0) target = $region37
    $region36: #{tpu_custom_call.1} parent=1 // pred_region
      %95 = dma.done [#allocation7], 768
    $region37: #{tpu_custom_call.1} parent=1 // pred_fallthru
      _
    // Predicated region
    $region38: #{tpu_custom_call.1} parent=1 // pred_check
      _
    $region39: #{tpu_custom_call.1} parent=1 // pred_check_branch
      %97 = sbr.rel (0) target = $region41
    $region40: #{tpu_custom_call.1} parent=1 // pred_region
      %99 = dma.done [#allocation7], 3072
    $region41: #{tpu_custom_call.1} parent=1 // pred_fallthru
      _
    // Predicated region
    $region42: #{tpu_custom_call.1} parent=1 // pred_check
      _
    $region43: #{tpu_custom_call.1} parent=1 // pred_check_branch
      %101 = sbr.rel (0) target = $region45
    $region44: #{tpu_custom_call.1} parent=1 // pred_region
      %103 = dma.done [#allocation10], 512
    $region45: #{tpu_custom_call.1} parent=1 // pred_fallthru
      _
    // Predicated region
    $region46: #{tpu_custom_call.1} parent=1 // pred_check
      _
    $region47: #{tpu_custom_call.1} parent=1 // pred_check_branch
      %105 = sbr.rel (0) target = $region49
    $region48: #{tpu_custom_call.1} parent=1 // pred_region
      %107 = dma.done [#allocation10], 1024
    $region49: #{tpu_custom_call.1} parent=1 // pred_fallthru
      _
    %p109 = scmp.eq.s32.totalorder 0, 0
    // Predicated region
    $region50: #{tpu_custom_call.1} parent=1 // pred_check
      %p110 = pneg %p109
    $region51: #{tpu_custom_call.1} parent=1 // pred_check_branch
      %112 = sbr.rel (%p110) target = $region53
    $region52: #{tpu_custom_call.1} parent=1 // pred_region
      %113 = vst [vmem:[#allocation2] sm:$0xff] 0.0
      %114 = vst [vmem:[#allocation2 + $0x8] sm:$0xff] 0.0
      %115 = vst [vmem:[#allocation2 + $0x10] sm:$0xff] 0.0
      %116 = vst [vmem:[#allocation2 + $0x18] sm:$0xff] 0.0
      %117 = vst [vmem:[#allocation2 + $0x20] sm:$0xff] 0.0
      %118 = vst [vmem:[#allocation2 + $0x28] sm:$0xff] 0.0
      %119 = vst [vmem:[#allocation2 + $0x30] sm:$0xff] 0.0
      %120 = vst [vmem:[#allocation2 + $0x38] sm:$0xff] 0.0
      %121 = vst [vmem:[#allocation2 + $0x40] sm:$0xff] 0.0
      %122 = vst [vmem:[#allocation2 + $0x48] sm:$0xff] 0.0
      %123 = vst [vmem:[#allocation2 + $0x50] sm:$0xff] 0.0
      %124 = vst [vmem:[#allocation2 + $0x58] sm:$0xff] 0.0
    $region53: #{tpu_custom_call.1} parent=1 // pred_fallthru
      _
    %v125 = vld [vmem:[#allocation3] sm:$0xf]
    %v126 = vld [vmem:[#allocation3 + $0x4] sm:$0xf]
    %v127 = vld [vmem:[#allocation3 + $0x8] sm:$0xf]
    %v128 = vld [vmem:[#allocation3 + $0xc] sm:$0xf]
    %v129 = vld [vmem:[#allocation6] sm:$0xf]
    %v130 = vld [vmem:[#allocation6 + $0x4] sm:$0xf]
    %v131 = vld [vmem:[#allocation6 + $0x8] sm:$0xf]
    %v132 = vld [vmem:[#allocation6 + $0xc] sm:$0xf]
    %v133 = vld [vmem:[#allocation6 + $0x10] sm:$0xf]
    %v134 = vld [vmem:[#allocation6 + $0x14] sm:$0xf]
    %v135 = vld [vmem:[#allocation6 + $0x18] sm:$0xf]
    %v136 = vld [vmem:[#allocation6 + $0x1c] sm:$0xf]
    %v137 = vld [vmem:[#allocation6 + $0x20] sm:$0xf]
    %v138 = vld [vmem:[#allocation6 + $0x24] sm:$0xf]
    %v139 = vld [vmem:[#allocation6 + $0x28] sm:$0xf]
    %v140 = vld [vmem:[#allocation6 + $0x2c] sm:$0xf]
    %v141 = vld [vmem:[#allocation2] sm:$0xff]
    %v142 = vld [vmem:[#allocation2 + $0x18] sm:$0xff]
    %v143 = vld [vmem:[#allocation2 + $0x30] sm:$0xff]
    %v144 = vld [vmem:[#allocation2 + $0x48] sm:$0xff]
    %v149 = vunpack.c.l.b16 %v129
    %v150 = vunpack.c.l.b16 %v130
    %v151 = vunpack.c.l.b16 %v131
    %v152 = vunpack.c.l.b16 %v132
    %v153 = vpack.c.b16 %v150, %v149
    %v154 = vpack.c.b16 %v152, %v151
    %v159 = vunpack.c.l.b16 %v125
    %v160 = vunpack.c.l.b16 %v126
    %v161 = vunpack.c.l.b16 %v127
    %v162 = vunpack.c.l.b16 %v128
    %v163 = vpack.c.b16 %v160, %v159
    %v164 = vpack.c.b16 %v162, %v161
    %vm167 = vcmask 261120
    %v169 = vsel %vm167, %v153, 0
    %v172 = vsel %vm167, %v154, 0
    %174 = vmatpush.bf16.msra.mxu0 0
    %175 = vmatpush.bf16.msra.mxu0 0
    %176 = vmatpush.bf16.msra.mxu0 0
    %177 = vmatpush.bf16.msra.mxu0 0
    %178 = vmatpush.bf16.msra.mxu0 0
    %179 = vmatpush.bf16.msra.mxu0 0
    %180 = vmatpush.bf16.msra.mxu0 %v164
    %181 = vmatpush.bf16.msra.mxu0 %v163
    %182 = vmatmul.bf16.gmra.mxu0 %v169
    %v183 = vpop.f32.mrf.mxu0
    %v184 = vadd.f32 0.0, %v183
    %v185 = vpop.f32.mrf.mxu0
    %v186 = vadd.f32 0.0, %v185
    %187 = vmatmul.bf16.gmra.mxu0 %v172
    %v188 = vpop.f32.mrf.mxu0
    %v189 = vadd.f32 0.0, %v188
    %v190 = vpop.f32.mrf.mxu0
    %v191 = vadd.f32 0.0, %v190
    %192 = vdwg.mxu0
    %v193 = vadd.f32 %v141, %v184
    %v194 = vadd.f32 %v142, %v186
    %v195 = vadd.f32 %v143, %v189
    %v196 = vadd.f32 %v144, %v191
    %197 = vst [vmem:[#allocation2] sm:$0xff] %v193
    %198 = vst [vmem:[#allocation2 + $0x18] sm:$0xff] %v194
    %199 = vst [vmem:[#allocation2 + $0x30] sm:$0xff] %v195
    %200 = vst [vmem:[#allocation2 + $0x48] sm:$0xff] %v196
    %v201 = vld [vmem:[#allocation2 + $0x8] sm:$0xff]
    %v202 = vld [vmem:[#allocation2 + $0x20] sm:$0xff]
    %v203 = vld [vmem:[#allocation2 + $0x38] sm:$0xff]
    %v204 = vld [vmem:[#allocation2 + $0x50] sm:$0xff]
    %v209 = vunpack.c.l.b16 %v133
    %v210 = vunpack.c.l.b16 %v134
    %v211 = vunpack.c.l.b16 %v135
    %v212 = vunpack.c.l.b16 %v136
    %v213 = vpack.c.b16 %v210, %v209
    %v214 = vpack.c.b16 %v212, %v211
    %v216 = vsel %vm167, %v213, 0
    %v219 = vsel %vm167, %v214, 0
    %221 = vmatpush.bf16.msra.mxu0 0
    %222 = vmatpush.bf16.msra.mxu0 0
    %223 = vmatpush.bf16.msra.mxu0 0
    %224 = vmatpush.bf16.msra.mxu0 0
    %225 = vmatpush.bf16.msra.mxu0 0
    %226 = vmatpush.bf16.msra.mxu0 0
    %227 = vmatpush.bf16.msra.mxu0 %v164
    %228 = vmatpush.bf16.msra.mxu0 %v163
    %229 = vmatmul.bf16.gmra.mxu0 %v216
    %v230 = vpop.f32.mrf.mxu0
    %v231 = vadd.f32 0.0, %v230
    %v232 = vpop.f32.mrf.mxu0
    %v233 = vadd.f32 0.0, %v232
    %234 = vmatmul.bf16.gmra.mxu0 %v219
    %v235 = vpop.f32.mrf.mxu0
    %v236 = vadd.f32 0.0, %v235
    %v237 = vpop.f32.mrf.mxu0
    %v238 = vadd.f32 0.0, %v237
    %239 = vdwg.mxu0
    %v240 = vadd.f32 %v201, %v231
    %v241 = vadd.f32 %v202, %v233
    %v242 = vadd.f32 %v203, %v236
    %v243 = vadd.f32 %v204, %v238
    %244 = vst [vmem:[#allocation2 + $0x8] sm:$0xff] %v240
    %245 = vst [vmem:[#allocation2 + $0x20] sm:$0xff] %v241
    %246 = vst [vmem:[#allocation2 + $0x38] sm:$0xff] %v242
    %247 = vst [vmem:[#allocation2 + $0x50] sm:$0xff] %v243
    %v248 = vld [vmem:[#allocation2 + $0x10] sm:$0xff]
    %v249 = vld [vmem:[#allocation2 + $0x28] sm:$0xff]
    %v250 = vld [vmem:[#allocation2 + $0x40] sm:$0xff]
    %v251 = vld [vmem:[#allocation2 + $0x58] sm:$0xff]
    %v256 = vunpack.c.l.b16 %v137
    %v257 = vunpack.c.l.b16 %v138
    %v258 = vunpack.c.l.b16 %v139
    %v259 = vunpack.c.l.b16 %v140
    %v260 = vpack.c.b16 %v257, %v256
    %v261 = vpack.c.b16 %v259, %v258
    %v263 = vsel %vm167, %v260, 0
    %v266 = vsel %vm167, %v261, 0
    %268 = vmatpush.bf16.msra.mxu0 0
    %269 = vmatpush.bf16.msra.mxu0 0
    %270 = vmatpush.bf16.msra.mxu0 0
    %271 = vmatpush.bf16.msra.mxu0 0
    %272 = vmatpush.bf16.msra.mxu0 0
    %273 = vmatpush.bf16.msra.mxu0 0
    %274 = vmatpush.bf16.msra.mxu0 %v164
    %275 = vmatpush.bf16.msra.mxu0 %v163
    %276 = vmatmul.bf16.gmra.mxu0 %v263
    %v277 = vpop.f32.mrf.mxu0
    %v278 = vadd.f32 0.0, %v277
    %v279 = vpop.f32.mrf.mxu0
    %v280 = vadd.f32 0.0, %v279
    %281 = vmatmul.bf16.gmra.mxu0 %v266
    %v282 = vpop.f32.mrf.mxu0
    %v283 = vadd.f32 0.0, %v282
    %v284 = vpop.f32.mrf.mxu0
    %v285 = vadd.f32 0.0, %v284
    %286 = vdwg.mxu0
    %v287 = vadd.f32 %v248, %v278
    %v288 = vadd.f32 %v249, %v280
    %v289 = vadd.f32 %v250, %v283
    %v290 = vadd.f32 %v251, %v285
    %291 = vst [vmem:[#allocation2 + $0x10] sm:$0xff] %v287
    %292 = vst [vmem:[#allocation2 + $0x28] sm:$0xff] %v288
    %293 = vst [vmem:[#allocation2 + $0x40] sm:$0xff] %v289
    %294 = vst [vmem:[#allocation2 + $0x58] sm:$0xff] %v290
    // Predicated region
    $region54: #{tpu_custom_call.1} parent=1 // pred_check
      %p295 = pneg %p109
    $region55: #{tpu_custom_call.1} parent=1 // pred_check_branch
      %297 = sbr.rel (%p295) target = $region57
    $region56: #{tpu_custom_call.1} parent=1 // pred_region
      %v298 = vld [vmem:[#allocation2] sm:$0xff]
      %v299 = vld [vmem:[#allocation2 + $0x8] sm:$0xff]
      %v300 = vld [vmem:[#allocation2 + $0x10] sm:$0xff]
      %v301 = vld [vmem:[#allocation2 + $0x18] sm:$0xff]
      %v302 = vld [vmem:[#allocation2 + $0x20] sm:$0xff]
      %v303 = vld [vmem:[#allocation2 + $0x28] sm:$0xff]
      %v304 = vld [vmem:[#allocation2 + $0x30] sm:$0xff]
      %v305 = vld [vmem:[#allocation2 + $0x38] sm:$0xff]
      %v306 = vld [vmem:[#allocation2 + $0x40] sm:$0xff]
      %v307 = vld [vmem:[#allocation2 + $0x48] sm:$0xff]
      %v308 = vld [vmem:[#allocation2 + $0x50] sm:$0xff]
      %v309 = vld [vmem:[#allocation2 + $0x58] sm:$0xff]
      %v310 = vpack.c.bf16 %v301, %v298
      %v311 = vpack.c.bf16 %v302, %v299
      %v312 = vpack.c.bf16 %v303, %v300
      %v313 = vpack.c.bf16 %v307, %v304
      %v314 = vpack.c.bf16 %v308, %v305
      %v315 = vpack.c.bf16 %v309, %v306
      %v316 = vld [vmem:[#allocation8] sm:$0xf]
      %v317 = vld [vmem:[#allocation8 + $0x4] sm:$0xf]
      %v318 = vld [vmem:[#allocation8 + $0x8] sm:$0xf]
      %v319 = vld [vmem:[#allocation8 + $0xc] sm:$0xf]
      %v320 = vld [vmem:[#allocation8 + $0x10] sm:$0xf]
      %v321 = vld [vmem:[#allocation8 + $0x14] sm:$0xf]
      %v322 = vld [vmem:[#allocation8 + $0x18] sm:$0xf]
      %v323 = vld [vmem:[#allocation8 + $0x1c] sm:$0xf]
      %v324 = vld [vmem:[#allocation8 + $0x20] sm:$0xf]
      %v325 = vld [vmem:[#allocation8 + $0x24] sm:$0xf]
      %v326 = vld [vmem:[#allocation8 + $0x28] sm:$0xf]
      %v327 = vld [vmem:[#allocation8 + $0x2c] sm:$0xf]
      %v328 = vld [vmem:[#allocation8 + $0x30] sm:$0xf]
      %v329 = vld [vmem:[#allocation8 + $0x34] sm:$0xf]
      %v330 = vld [vmem:[#allocation8 + $0x38] sm:$0xf]
      %v331 = vld [vmem:[#allocation8 + $0x3c] sm:$0xf]
      %v332 = vld [vmem:[#allocation8 + $0x40] sm:$0xf]
      %v333 = vld [vmem:[#allocation8 + $0x44] sm:$0xf]
      %v334 = vld [vmem:[#allocation8 + $0x48] sm:$0xf]
      %v335 = vld [vmem:[#allocation8 + $0x4c] sm:$0xf]
      %v336 = vld [vmem:[#allocation8 + $0x50] sm:$0xf]
      %v337 = vld [vmem:[#allocation8 + $0x54] sm:$0xf]
      %v338 = vld [vmem:[#allocation8 + $0x58] sm:$0xf]
      %v339 = vld [vmem:[#allocation8 + $0x5c] sm:$0xf]
      %v340 = vld [vmem:[#allocation8 + $0x60] sm:$0xf]
      %v341 = vld [vmem:[#allocation8 + $0x64] sm:$0xf]
      %v342 = vld [vmem:[#allocation8 + $0x68] sm:$0xf]
      %v343 = vld [vmem:[#allocation8 + $0x6c] sm:$0xf]
      %v344 = vld [vmem:[#allocation8 + $0x70] sm:$0xf]
      %v345 = vld [vmem:[#allocation8 + $0x74] sm:$0xf]
      %v346 = vld [vmem:[#allocation8 + $0x78] sm:$0xf]
      %v347 = vld [vmem:[#allocation8 + $0x7c] sm:$0xf]
      %v348 = vld [vmem:[#allocation8 + $0x80] sm:$0xf]
      %v349 = vld [vmem:[#allocation8 + $0x84] sm:$0xf]
      %v350 = vld [vmem:[#allocation8 + $0x88] sm:$0xf]
      %v351 = vld [vmem:[#allocation8 + $0x8c] sm:$0xf]
      %v352 = vld [vmem:[#allocation8 + $0x90] sm:$0xf]
      %v353 = vld [vmem:[#allocation8 + $0x94] sm:$0xf]
      %v354 = vld [vmem:[#allocation8 + $0x98] sm:$0xf]
      %v355 = vld [vmem:[#allocation8 + $0x9c] sm:$0xf]
      %v356 = vld [vmem:[#allocation8 + $0xa0] sm:$0xf]
      %v357 = vld [vmem:[#allocation8 + $0xa4] sm:$0xf]
      %v358 = vld [vmem:[#allocation8 + $0xa8] sm:$0xf]
      %v359 = vld [vmem:[#allocation8 + $0xac] sm:$0xf]
      %v360 = vld [vmem:[#allocation8 + $0xb0] sm:$0xf]
      %v361 = vld [vmem:[#allocation8 + $0xb4] sm:$0xf]
      %v362 = vld [vmem:[#allocation8 + $0xb8] sm:$0xf]
      %v363 = vld [vmem:[#allocation8 + $0xbc] sm:$0xf]
      %v364 = vld [vmem:[#allocation9] sm:$0xff]
      %v365 = vld [vmem:[#allocation9 + $0x8] sm:$0xff]
      %v366 = vld [vmem:[#allocation9 + $0x10] sm:$0xff]
      %v367 = vld [vmem:[#allocation9 + $0x18] sm:$0xff]
      %v416 = vunpack.c.l.b16 %v316
      %v417 = vunpack.c.l.b16 %v317
      %v418 = vunpack.c.l.b16 %v318
      %v419 = vunpack.c.l.b16 %v319
      %v420 = vunpack.c.l.b16 %v320
      %v421 = vunpack.c.l.b16 %v321
      %v422 = vunpack.c.l.b16 %v322
      %v423 = vunpack.c.l.b16 %v323
      %v424 = vunpack.c.l.b16 %v324
      %v425 = vunpack.c.l.b16 %v325
      %v426 = vunpack.c.l.b16 %v326
      %v427 = vunpack.c.l.b16 %v327
      %v428 = vunpack.c.l.b16 %v328
      %v429 = vunpack.c.l.b16 %v329
      %v430 = vunpack.c.l.b16 %v330
      %v431 = vunpack.c.l.b16 %v331
      %v432 = vunpack.c.l.b16 %v332
      %v433 = vunpack.c.l.b16 %v333
      %v434 = vunpack.c.l.b16 %v334
      %v435 = vunpack.c.l.b16 %v335
      %v436 = vunpack.c.l.b16 %v336
      %v437 = vunpack.c.l.b16 %v337
      %v438 = vunpack.c.l.b16 %v338
      %v439 = vunpack.c.l.b16 %v339
      %v440 = vunpack.c.l.b16 %v340
      %v441 = vunpack.c.l.b16 %v341
      %v442 = vunpack.c.l.b16 %v342
      %v443 = vunpack.c.l.b16 %v343
      %v444 = vunpack.c.l.b16 %v344
      %v445 = vunpack.c.l.b16 %v345
      %v446 = vunpack.c.l.b16 %v346
      %v447 = vunpack.c.l.b16 %v347
      %v448 = vunpack.c.l.b16 %v348
      %v449 = vunpack.c.l.b16 %v349
      %v450 = vunpack.c.l.b16 %v350
      %v451 = vunpack.c.l.b16 %v351
      %v452 = vunpack.c.l.b16 %v352
      %v453 = vunpack.c.l.b16 %v353
      %v454 = vunpack.c.l.b16 %v354
      %v455 = vunpack.c.l.b16 %v355
      %v456 = vunpack.c.l.b16 %v356
      %v457 = vunpack.c.l.b16 %v357
      %v458 = vunpack.c.l.b16 %v358
      %v459 = vunpack.c.l.b16 %v359
      %v460 = vunpack.c.l.b16 %v360
      %v461 = vunpack.c.l.b16 %v361
      %v462 = vunpack.c.l.b16 %v362
      %v463 = vunpack.c.l.b16 %v363
      %v464 = vpack.c.b16 %v417, %v416
      %v465 = vpack.c.b16 %v419, %v418
      %v466 = vpack.c.b16 %v421, %v420
      %v467 = vpack.c.b16 %v423, %v422
      %v468 = vpack.c.b16 %v425, %v424
      %v469 = vpack.c.b16 %v427, %v426
      %v470 = vpack.c.b16 %v429, %v428
      %v471 = vpack.c.b16 %v431, %v430
      %v472 = vpack.c.b16 %v433, %v432
      %v473 = vpack.c.b16 %v435, %v434
      %v474 = vpack.c.b16 %v437, %v436
      %v475 = vpack.c.b16 %v439, %v438
      %v476 = vpack.c.b16 %v441, %v440
      %v477 = vpack.c.b16 %v443, %v442
      %v478 = vpack.c.b16 %v445, %v444
      %v479 = vpack.c.b16 %v447, %v446
      %v480 = vpack.c.b16 %v449, %v448
      %v481 = vpack.c.b16 %v451, %v450
      %v482 = vpack.c.b16 %v453, %v452
      %v483 = vpack.c.b16 %v455, %v454
      %v484 = vpack.c.b16 %v457, %v456
      %v485 = vpack.c.b16 %v459, %v458
      %v486 = vpack.c.b16 %v461, %v460
      %v487 = vpack.c.b16 %v463, %v462
      %512 = vmatpush.bf16.msra.mxu0 %v471
      %513 = vmatpush.bf16.msra.mxu0 %v470
      %514 = vmatpush.bf16.msra.mxu0 %v469
      %515 = vmatpush.bf16.msra.mxu0 %v468
      %516 = vmatpush.bf16.msra.mxu0 %v467
      %517 = vmatpush.bf16.msra.mxu0 %v466
      %518 = vmatpush.bf16.msra.mxu0 %v465
      %519 = vmatpush.bf16.msra.mxu0 %v464
      %520 = vmatmul.bf16.gmra.mxu0 %v310
      %v521 = vpop.f32.mrf.mxu0
      %v522 = vadd.f32 %v364, %v521
      %v523 = vpop.f32.mrf.mxu0
      %v524 = vadd.f32 %v365, %v523
      %525 = vmatmul.bf16.gmra.mxu0 %v313
      %v526 = vpop.f32.mrf.mxu0
      %v527 = vadd.f32 %v366, %v526
      %v528 = vpop.f32.mrf.mxu0
      %v529 = vadd.f32 %v367, %v528
      %530 = vdwg.mxu0
      %531 = vmatpush.bf16.msra.mxu0 %v479
      %532 = vmatpush.bf16.msra.mxu0 %v478
      %533 = vmatpush.bf16.msra.mxu0 %v477
      %534 = vmatpush.bf16.msra.mxu0 %v476
      %535 = vmatpush.bf16.msra.mxu0 %v475
      %536 = vmatpush.bf16.msra.mxu0 %v474
      %537 = vmatpush.bf16.msra.mxu0 %v473
      %538 = vmatpush.bf16.msra.mxu0 %v472
      %539 = vmatmul.bf16.gmra.mxu0 %v311
      %v540 = vpop.f32.mrf.mxu0
      %v541 = vadd.f32 %v522, %v540
      %v542 = vpop.f32.mrf.mxu0
      %v543 = vadd.f32 %v524, %v542
      %544 = vmatmul.bf16.gmra.mxu0 %v314
      %v545 = vpop.f32.mrf.mxu0
      %v546 = vadd.f32 %v527, %v545
      %v547 = vpop.f32.mrf.mxu0
      %v548 = vadd.f32 %v529, %v547
      %549 = vdwg.mxu0
      %550 = vmatpush.bf16.msra.mxu0 %v487
      %551 = vmatpush.bf16.msra.mxu0 %v486
      %552 = vmatpush.bf16.msra.mxu0 %v485
      %553 = vmatpush.bf16.msra.mxu0 %v484
      %554 = vmatpush.bf16.msra.mxu0 %v483
      %555 = vmatpush.bf16.msra.mxu0 %v482
      %556 = vmatpush.bf16.msra.mxu0 %v481
      %557 = vmatpush.bf16.msra.mxu0 %v480
      %558 = vmatmul.bf16.gmra.mxu0 %v312
      %v559 = vpop.f32.mrf.mxu0
      %v560 = vadd.f32 %v541, %v559
      %v561 = vpop.f32.mrf.mxu0
      %v562 = vadd.f32 %v543, %v561
      %563 = vmatmul.bf16.gmra.mxu0 %v315
      %v564 = vpop.f32.mrf.mxu0
      %v565 = vadd.f32 %v546, %v564
      %v566 = vpop.f32.mrf.mxu0
      %v567 = vadd.f32 %v548, %v566
      %568 = vdwg.mxu0
      %v569 = vld [vmem:[%s4] sm:$0x1]
      %v570 = vperm.slane %v569, 0
      %v571 = vmul.f32 %v560, %v570
      %v572 = vmul.f32 %v562, %v570
      %v573 = vmul.f32 %v565, %v570
      %v574 = vmul.f32 %v567, %v570
      %v575 = vld [vmem:[%s4 + $0x1] sm:$0x1]
      %v576 = vperm.slane %v575, 0
      %v577 = vadd.f32 %v571, %v576
      %v578 = vadd.f32 %v572, %v576
      %v579 = vadd.f32 %v573, %v576
      %v580 = vadd.f32 %v574, %v576
      %v581 = vmax.f32 %v577, 0.0
      %v582 = vmax.f32 %v578, 0.0
      %v583 = vmax.f32 %v579, 0.0
      %v584 = vmax.f32 %v580, 0.0
      %585 = vst [vmem:[#allocation12] sm:$0xff] %v581
      %586 = vst [vmem:[#allocation12 + $0x8] sm:$0xff] %v582
      %587 = vst [vmem:[#allocation12 + $0x10] sm:$0xff] %v583
      %588 = vst [vmem:[#allocation12 + $0x18] sm:$0xff] %v584
      %v589 = vpack.c.bf16 %v582, %v581
      %v590 = vpack.c.bf16 %v584, %v583
      %v591 = vld [vmem:[#allocation11] sm:$0xf]
      %v592 = vld [vmem:[#allocation11 + $0x4] sm:$0xf]
      %v593 = vld [vmem:[#allocation11 + $0x8] sm:$0xf]
      %v594 = vld [vmem:[#allocation11 + $0xc] sm:$0xf]
      %v595 = vld [vmem:[#allocation11 + $0x10] sm:$0xf]
      %v596 = vld [vmem:[#allocation11 + $0x14] sm:$0xf]
      %v597 = vld [vmem:[#allocation11 + $0x18] sm:$0xf]
      %v598 = vld [vmem:[#allocation11 + $0x1c] sm:$0xf]
      %v599 = vld [vmem:[#allocation11 + $0x20] sm:$0xf]
      %v600 = vld [vmem:[#allocation11 + $0x24] sm:$0xf]
      %v601 = vld [vmem:[#allocation11 + $0x28] sm:$0xf]
      %v602 = vld [vmem:[#allocation11 + $0x2c] sm:$0xf]
      %v603 = vld [vmem:[#allocation11 + $0x30] sm:$0xf]
      %v604 = vld [vmem:[#allocation11 + $0x34] sm:$0xf]
      %v605 = vld [vmem:[#allocation11 + $0x38] sm:$0xf]
      %v606 = vld [vmem:[#allocation11 + $0x3c] sm:$0xf]
      %v607 = vld [vmem:[%s6] sm:$0x1]
      %v609 = vperm.slane %v607, 0
      %v627 = vunpack.c.l.b16 %v591
      %v628 = vunpack.c.l.b16 %v592
      %v629 = vunpack.c.l.b16 %v593
      %v630 = vunpack.c.l.b16 %v594
      %v631 = vunpack.c.l.b16 %v595
      %v632 = vunpack.c.l.b16 %v596
      %v633 = vunpack.c.l.b16 %v597
      %v634 = vunpack.c.l.b16 %v598
      %v635 = vunpack.c.l.b16 %v599
      %v636 = vunpack.c.l.b16 %v600
      %v637 = vunpack.c.l.b16 %v601
      %v638 = vunpack.c.l.b16 %v602
      %v639 = vunpack.c.l.b16 %v603
      %v640 = vunpack.c.l.b16 %v604
      %v641 = vunpack.c.l.b16 %v605
      %v642 = vunpack.c.l.b16 %v606
      %v643 = vpack.c.b16 %v628, %v627
      %v644 = vpack.c.b16 %v630, %v629
      %v645 = vpack.c.b16 %v632, %v631
      %v646 = vpack.c.b16 %v634, %v633
      %v647 = vpack.c.b16 %v636, %v635
      %v648 = vpack.c.b16 %v638, %v637
      %v649 = vpack.c.b16 %v640, %v639
      %v650 = vpack.c.b16 %v642, %v641
      %659 = vmatpush.bf16.msra.mxu0 %v650
      %660 = vmatpush.bf16.msra.mxu0 %v649
      %661 = vmatpush.bf16.msra.mxu0 %v648
      %662 = vmatpush.bf16.msra.mxu0 %v647
      %663 = vmatpush.bf16.msra.mxu0 %v646
      %664 = vmatpush.bf16.msra.mxu0 %v645
      %665 = vmatpush.bf16.msra.mxu0 %v644
      %666 = vmatpush.bf16.msra.mxu0 %v643
      %667 = vmatmul.bf16.gmra.mxu0 %v589
      %v668 = vpop.f32.mrf.mxu0
      %v669 = vadd.f32 %v609, %v668
      %v670 = vpop.f32.mrf.mxu0
      %v671 = vadd.f32 %v609, %v670
      %672 = vmatmul.bf16.gmra.mxu0 %v590
      %v673 = vpop.f32.mrf.mxu0
      %v674 = vadd.f32 %v609, %v673
      %v675 = vpop.f32.mrf.mxu0
      %v676 = vadd.f32 %v609, %v675
      %677 = vdwg.mxu0
      %v678 = vpack.c.bf16 %v669, %v669
      %v679 = vpack.c.bf16 %v671, %v671
      %v680 = vpack.c.bf16 %v674, %v674
      %v681 = vpack.c.bf16 %v676, %v676
      %682 = vst [vmem:[#allocation13] sm:$0xf] %v678
      %683 = vst [vmem:[#allocation13 + $0x4] sm:$0xf] %v679
      %684 = vst [vmem:[#allocation13 + $0x8] sm:$0xf] %v680
      %685 = vst [vmem:[#allocation13 + $0xc] sm:$0xf] %v681
    $region57: #{tpu_custom_call.1} parent=1 // pred_fallthru
      _
    // Predicated region
    $region58: #{tpu_custom_call.1} parent=1 // pred_check
      _
    $region59: #{tpu_custom_call.1} parent=1 // pred_check_branch
      %687 = sbr.rel (0) target = $region61
    $region60: #{tpu_custom_call.1} parent=1 // pred_region
      %689 = vsyncadd [#allocation5], 0
      %s690 = sshll.u32 [#allocation12], 4
      %s691 = int_to_ptr.vmem [resolvable:$true] %s690
      %s692 = sshll.u32 %s7, 4
      %s693 = int_to_ptr.hbm [resolvable:$true] %s692
      %698 = dma.vmem_to_hbm [thread:$0]  %s691, 512, %s693, [#allocation5], 128, 128, 8
    $region61: #{tpu_custom_call.1} parent=1 // pred_fallthru
      _
    // Predicated region
    $region62: #{tpu_custom_call.1} parent=1 // pred_check
      _
    $region63: #{tpu_custom_call.1} parent=1 // pred_check_branch
      %700 = sbr.rel (0) target = $region65
    $region64: #{tpu_custom_call.1} parent=1 // pred_region
      %702 = vsyncadd [#allocation14], 0
      %s703 = sshll.u32 [#allocation13], 4
      %s704 = int_to_ptr.vmem [resolvable:$true] %s703
      %s705 = sshll.u32 %s8, 4
      %s706 = int_to_ptr.hbm [resolvable:$true] %s705
      %711 = dma.vmem_to_hbm [thread:$0]  %s704, 256, %s706, [#allocation14], 64, 64, 4
    $region65: #{tpu_custom_call.1} parent=1 // pred_fallthru
      _
    // Predicated region
    $region66: #{tpu_custom_call.1} parent=1 // pred_check
      _
    $region67: #{tpu_custom_call.1} parent=1 // pred_check_branch
      %713 = sbr.rel (0) target = $region69
    $region68: #{tpu_custom_call.1} parent=1 // pred_region
      %715 = dma.done [#allocation5], 512
    $region69: #{tpu_custom_call.1} parent=1 // pred_fallthru
      _
    // Predicated region
    $region70: #{tpu_custom_call.1} parent=1 // pred_check
      _
    $region71: #{tpu_custom_call.1} parent=1 // pred_check_branch
      %717 = sbr.rel (0) target = $region73
    $region72: #{tpu_custom_call.1} parent=1 // pred_region
      %719 = dma.done [#allocation14], 256
    $region73: #{tpu_custom_call.1} parent=1 // pred_fallthru
      _
    %720 = vsyncpa [#allocation4], 1
    %721 = vsyncpa [#allocation7], 1
    %722 = vsyncpa [#allocation10], 1
    %723 = vsyncpa [#allocation5], 1
    %724 = vsyncpa [#allocation14], 1

</llo_original>
